<compile_context>
chip_gen: v7x
topology: tpu7x:2x2x1
jax: 0.10.0
libtpu: 0.0.40
codegen_flags: <defaults>
</compile_context>

<pallas_src>
import functools

import jax
import jax.numpy as jnp
import numpy as np
from jax import lax
from jax.experimental import pallas as pl
from jax.experimental.pallas import tpu as pltpu

_VMEM_LIMIT_BYTES = 48 * 1024 * 1024


# --------------------------------------------------------------------------------------
# Kernel A: fused linear_proj + skip_proj (+bias) + lane-dense attention scoring
# --------------------------------------------------------------------------------------
def _proj_kernel(x_ref, w_all_ref, a_all_ref, bias_ref,
                 proj_ref, skip_ref, scores_ref):
    hf = proj_ref.shape[-1]                                               # H * F_out
    x = x_ref[...]                                                        # (tm, F_pad)

    # one MXU pass for both projections: (tm, F_pad) x (F_pad, 2*HF)
    pw = jnp.dot(x, w_all_ref[...], preferred_element_type=jnp.float32)   # (tm, 2*HF)
    proj = pw[:, :hf]                                                     # f32, for scores
    proj_ref[...] = proj.astype(proj_ref.dtype)                           # stream bf16
    skip_ref[...] = pw[:, hf:] + bias_ref[...]                            # bias folded here

    # single block-diagonal scoring matmul -> lane-dense (2H, tm) slab:
    #   rows 0..H-1  : src scores  (sum_f proj[n, h*F_out+f] * a_src[h, f])
    #   rows H..2H-1 : tgt scores  (same with a_tgt)
    scores_ref[...] = lax.dot_general(a_all_ref[...], proj,
                                      (((1,), (1,)), ((), ())),
                                      preferred_element_type=jnp.float32)  # (2H, tm)


# --------------------------------------------------------------------------------------
# Kernel B: flash-style masked attention + skip + ELU epilogue (online softmax)
# --------------------------------------------------------------------------------------
def _attn_kernel(src_ref, tgt_ref, proj_ref, mask_ref, skip_ref, expand_ref,
                 out_ref, m_ref, l_ref, acc_ref, *, num_heads, f_out):
    ki = pl.program_id(1)

    @pl.when(ki == 0)
    def _():
        m_ref[...] = jnp.full(m_ref.shape, -jnp.inf, m_ref.dtype)
        l_ref[...] = jnp.zeros(l_ref.shape, l_ref.dtype)
        acc_ref[...] = jnp.zeros(acc_ref.shape, acc_ref.dtype)

    neg_inf = jnp.float32(-jnp.inf)
    edge = mask_ref[...].astype(jnp.int32) > 0                            # (tq, tk) bool
    proj_k = proj_ref[...]                                                # (tk, HF) bf16
    src_all = src_ref[...]                                                # (tq, H)  f32
    tgt_all = tgt_ref[...]                                                # (H, tk)  f32
    m_old = m_ref[...]                                                    # (tq, H)  f32

    m_cols, sum_cols, num_pieces = [], [], []
    for h in range(num_heads):                                            # static unroll, H small
        cols = slice(h * f_out, (h + 1) * f_out)

        s = src_all[:, h:h + 1] + tgt_all[h:h + 1, :]                     # (tq, tk)
        s = jnp.where(s > 0, s, 0.2 * s)                                  # LeakyReLU(0.2)
        s = jnp.where(edge, s, neg_inf)                                   # mask once (0/1 mask)

        m_new = jnp.maximum(m_old[:, h:h + 1], jnp.max(s, axis=-1, keepdims=True))
        m_safe = jnp.maximum(m_new, jnp.float32(-1e30))                   # guard all-masked rows
        p = jnp.exp(s - m_safe)                                           # exp(-inf) = 0

        m_cols.append(m_new)
        sum_cols.append(jnp.sum(p, axis=-1, keepdims=True))
        num_pieces.append(jnp.dot(p.astype(proj_k.dtype), proj_k[:, cols],
                                  preferred_element_type=jnp.float32))    # (tq, F_out)

    # one full-width update per (qi, ki) step — no per-head masked RMW stores
    m_new_full = jnp.concatenate(m_cols, axis=-1)                         # (tq, H)
    sums_full = jnp.concatenate(sum_cols, axis=-1)                        # (tq, H)
    num_full = jnp.concatenate(num_pieces, axis=-1)                       # (tq, HF)
    m_safe_full = jnp.maximum(m_new_full, jnp.float32(-1e30))
    alpha = jnp.exp(m_old - m_safe_full)                                  # (tq, H)
    # per-head -> per-lane expansion via MXU (expand is the 0/1 (H, HF) matrix)
    alpha_lane = jnp.dot(alpha, expand_ref[...],
                         preferred_element_type=jnp.float32)              # (tq, HF)

    acc_ref[...] = alpha_lane * acc_ref[...] + num_full
    l_ref[...] = alpha * l_ref[...] + sums_full
    m_ref[...] = m_new_full

    @pl.when(ki == pl.num_programs(1) - 1)
    def _():
        # deferred softmax normalization, full-width epilogue, single unmasked store
        inv = pl.reciprocal(l_ref[...] + 1e-16, approx=True)              # (tq, H)
        inv_lane = jnp.dot(inv, expand_ref[...],
                           preferred_element_type=jnp.float32)            # (tq, HF)
        out = acc_ref[...] * inv_lane + skip_ref[...]                     # skip has bias folded
        out_ref[...] = jnp.where(out > 0, out, jnp.expm1(out)).astype(out_ref.dtype)  # ELU


# --------------------------------------------------------------------------------------
# Wrapper reproducing GATLayerImp2.forward (concat=True, skip=True, bias, ELU, eval mode)
# connectivity_mask is assumed to be a binary (0/1) adjacency mask, as in the module.
# --------------------------------------------------------------------------------------
def _round_up(v, m):
    return (v + m - 1) // m * m


def _pick_tile(n_pad, cap):
    """Largest power-of-two multiple of 128 <= cap that divides n_pad, preferring >=2 tiles."""
    t = cap
    while t > 128 and (n_pad % t != 0 or n_pad // t < 2):
        t //= 2
    return t


def gat_layer_imp2(x, connectivity_mask, w, a_src, a_tgt, wskip, bias,
                   *, num_heads, num_out_features):
    N, F_in = x.shape
    H, F_out = num_heads, num_out_features
    HF = H * F_out

    # --- padding: keep flash tiling / pipelining for arbitrary N, align feature dim ---
    N_pad = _round_up(N, 256) if N >= 256 else 128
    F_pad = _round_up(F_in, 128)
    tq = _pick_tile(N_pad, 512)          # query tile  (v7x-safe, >=2 tiles -> both TCs)
    tk = 256 if N_pad % 256 == 0 else 128  # key tile (sequential axis)
    tm = _pick_tile(N_pad, 256)          # kernel-A row tile

    x_p = jnp.zeros((N_pad, F_pad), jnp.float32).at[:N, :F_in].set(x.astype(jnp.float32))
    mask_i8 = jnp.zeros((N_pad, N_pad), jnp.int8).at[:N, :N].set(
        (connectivity_mask > 0).astype(jnp.int8))

    # torch Linear weight is (HF, F_in); kernel computes x @ W.T, so feed (F_pad, HF).
    w_t = jnp.zeros((F_pad, HF), jnp.float32).at[:F_in, :].set(
        w.reshape(HF, F_in).T.astype(jnp.float32))
    wskip_t = jnp.zeros((F_pad, HF), jnp.float32).at[:F_in, :].set(
        wskip.reshape(HF, F_in).T.astype(jnp.float32))
    w_all = jnp.concatenate([w_t, wskip_t], axis=1)                       # (F_pad, 2*HF)

    # block-diagonal scoring matrices folded into one (2H, HF) operand
    eye_h = jnp.eye(H, dtype=jnp.float32)
    a_src_blk = jnp.einsum('hf,hg->ghf', a_src.reshape(H, F_out).astype(jnp.float32),
                           eye_h).reshape(H, HF)
    a_tgt_blk = jnp.einsum('hf,hg->ghf', a_tgt.reshape(H, F_out).astype(jnp.float32),
                           eye_h).reshape(H, HF)
    a_all = jnp.concatenate([a_src_blk, a_tgt_blk], axis=0)               # (2H, HF)

    bias2 = bias.reshape(1, HF).astype(jnp.float32)
    # 0/1 head->lane expansion matrix (used on MXU for alpha / 1/l lane broadcast)
    expand = jnp.repeat(jnp.eye(H, dtype=jnp.float32), F_out, axis=1)     # (H, HF)

    cparams_a = pltpu.CompilerParams(dimension_semantics=("parallel",),
                                     vmem_limit_bytes=_VMEM_LIMIT_BYTES)
    cparams_b = pltpu.CompilerParams(dimension_semantics=("parallel", "arbitrary"),
                                     vmem_limit_bytes=_VMEM_LIMIT_BYTES)

    # ---------------- kernel A: projection / skip(+bias) / scores ----------------
    proj, skip_b, scores = pl.pallas_call(
        _proj_kernel,
        out_shape=(jax.ShapeDtypeStruct((N_pad, HF), jnp.bfloat16),       # proj (bf16 stream)
                   jax.ShapeDtypeStruct((N_pad, HF), jnp.float32),        # skip + bias
                   jax.ShapeDtypeStruct((2 * H, N_pad), jnp.float32)),    # [src; tgt] scores
        grid_spec=pltpu.PrefetchScalarGridSpec(
            num_scalar_prefetch=0,
            grid=(N_pad // tm,),
            in_specs=[
                pl.BlockSpec((tm, F_pad), lambda i: (i, 0)),              # x tile
                pl.BlockSpec((F_pad, 2 * HF), lambda i: (0, 0)),          # [W | Wskip]
                pl.BlockSpec((2 * H, HF), lambda i: (0, 0)),              # [a_src; a_tgt] blocks
                pl.BlockSpec((1, HF), lambda i: (0, 0)),                  # bias
            ],
            out_specs=[
                pl.BlockSpec((tm, HF), lambda i: (i, 0)),                 # proj
                pl.BlockSpec((tm, HF), lambda i: (i, 0)),                 # skip + bias
                pl.BlockSpec((2 * H, tm), lambda i: (0, i)),              # scores (lane-dense)
            ]),
        compiler_params=cparams_a,
    )(x_p, w_all, a_all, bias2)

    # tiny layout plumbing between kernels (few KB): q-side scores need column layout
    src_nh = scores[:H, :].T                                              # (N_pad, H)
    tgt_hn = scores[H:, :]                                                # (H, N_pad)

    # ---------------- kernel B: flash-style attention + epilogue ----------------
    out_p = pl.pallas_call(
        functools.partial(_attn_kernel, num_heads=H, f_out=F_out),
        out_shape=jax.ShapeDtypeStruct((N_pad, HF), jnp.float32),
        grid_spec=pltpu.PrefetchScalarGridSpec(
            num_scalar_prefetch=0,
            grid=(N_pad // tq, N_pad // tk),
            in_specs=[
                pl.BlockSpec((tq, H), lambda qi, ki: (qi, 0)),            # src scores (q side)
                pl.BlockSpec((H, tk), lambda qi, ki: (0, ki)),            # tgt scores (k side)
                pl.BlockSpec((tk, HF), lambda qi, ki: (ki, 0)),           # proj (bf16 stream)
                pl.BlockSpec((tq, tk), lambda qi, ki: (qi, ki)),          # connectivity (int8)
                pl.BlockSpec((tq, HF), lambda qi, ki: (qi, 0)),           # skip + bias
                pl.BlockSpec((H, HF), lambda qi, ki: (0, 0)),             # head->lane expansion
            ],
            out_specs=pl.BlockSpec((tq, HF), lambda qi, ki: (qi, 0)),
            scratch_shapes=[
                pltpu.VMEM((tq, H), jnp.float32),                         # running max m
                pltpu.VMEM((tq, H), jnp.float32),                         # running denom l
                pltpu.VMEM((tq, HF), jnp.float32),                        # running numerator
            ]),
        compiler_params=cparams_b,
    )(src_nh, tgt_hn, proj, mask_i8, skip_b, expand)

    return out_p[:N], connectivity_mask


# --------------------------------------------------------------------------------------
# Pure-JAX replica of the PyTorch forward (eval mode) for validation
# --------------------------------------------------------------------------------------
def _reference(x, mask, w, a_src, a_tgt, wskip, bias, H, F_out):
    N, F_in = x.shape
    proj = (x @ w.T).reshape(N, H, F_out)
    src = jnp.sum(proj * a_src, -1, keepdims=True)           # (N, H, 1)
    tgt = jnp.sum(proj * a_tgt, -1, keepdims=True)           # (N, H, 1)
    src = jnp.transpose(src, (1, 0, 2))                      # (H, N, 1)
    tgt = jnp.transpose(tgt, (1, 2, 0))                      # (H, 1, N)
    sc = src + tgt
    sc = jnp.where(sc > 0, sc, 0.2 * sc)
    tmp = sc * mask
    mx = jnp.max(jnp.where(mask > 0, sc, -jnp.inf), -1, keepdims=True)
    e = jnp.exp(tmp - mx) * mask
    attn = e / (jnp.sum(e, -1, keepdims=True) + 1e-16)
    out = jnp.einsum('hij,hjf->hif', attn, jnp.transpose(proj, (1, 0, 2)))
    out = jnp.transpose(out, (1, 0, 2))                       # (N, H, F_out)
    out = out + (x @ wskip.T).reshape(N, H, F_out)            # skip projection
    out = out.reshape(N, H * F_out) + bias
    return jnp.where(out > 0, out, jnp.expm1(out))            # ELU


if __name__ == "__main__":
    N, F_in, F_out, H = 16, 16, 32, 4

    key = jax.random.PRNGKey(0)
    k = jax.random.split(key, 6)

    x = jax.random.normal(k[0], (N, F_in), jnp.float32)
    adj = (jax.random.uniform(k[1], (N, N)) < 0.4).astype(jnp.float32)
    connectivity_mask = jnp.maximum(adj, jnp.eye(N, dtype=jnp.float32))   # self loops

    def xavier(key_, shape, fan_in, fan_out):
        a = (6.0 / (fan_in + fan_out)) ** 0.5
        return jax.random.uniform(key_, shape, jnp.float32, -a, a)

    # deterministic synthetic parameters (shapes from GATLayer.__init__)
    w = xavier(k[2], (H * F_out, F_in), F_in, H * F_out)          # linear_proj.weight
    a_src = xavier(k[3], (1, H, F_out), H * F_out, F_out)         # scoring_fn_source
    a_tgt = xavier(k[4], (1, H, F_out), H * F_out, F_out)         # scoring_fn_target
    wskip = xavier(k[5], (H * F_out, F_in), F_in, H * F_out)      # skip_proj.weight
    bias = jnp.zeros((H * F_out,), jnp.float32)                   # bias (zero init)

    out, _ = gat_layer_imp2(x, connectivity_mask, w, a_src, a_tgt, wskip, bias,
                            num_heads=H, num_out_features=F_out)
    out = jax.block_until_ready(out)

    ref = _reference(x, connectivity_mask, w, a_src, a_tgt, wskip, bias, H, F_out)
    # tolerance covers bf16 streaming of proj / exp weights and the approx reciprocal
    np.testing.assert_allclose(np.asarray(out), np.asarray(ref), rtol=1e-2, atol=1e-2)

    print("KERNEL_OK")
</pallas_src>

<mosaic_0001>
module attributes {stable_mosaic.version = 11 : i64} {
  func.func @_proj_kernel(%arg0: i32, %arg1: memref<128x128xf32, #tpu.memory_space<vmem>>, %arg2: memref<128x256xf32, #tpu.memory_space<vmem>>, %arg3: memref<8x128xf32, #tpu.memory_space<vmem>>, %arg4: memref<1x128xf32, #tpu.memory_space<vmem>>, %arg5: memref<128x128xbf16, #tpu.memory_space<vmem>>, %arg6: memref<128x128xf32, #tpu.memory_space<vmem>>, %arg7: memref<8x128xf32, #tpu.memory_space<vmem>>) attributes {dimension_semantics = [#tpu.dimension_semantics<parallel>], iteration_bounds = array<i64: 1>, scalar_prefetch = 0 : i64, scratch_operands = 0 : i64, tpu.core_type = #tpu.core_type<tc>, window_params = [{transform_indices = @transform_0, window_bounds = array<i64: 128, 128>}, {pipeline_mode = #tpu.pipeline_mode<synchronous>, transform_indices = @transform_1, window_bounds = array<i64: 128, 256>}, {pipeline_mode = #tpu.pipeline_mode<synchronous>, transform_indices = @transform_2, window_bounds = array<i64: 8, 128>}, {pipeline_mode = #tpu.pipeline_mode<synchronous>, transform_indices = @transform_3, window_bounds = array<i64: 1, 128>}, {transform_indices = @transform_4, window_bounds = array<i64: 128, 128>}, {transform_indices = @transform_5, window_bounds = array<i64: 128, 128>}, {transform_indices = @transform_6, window_bounds = array<i64: 8, 128>}]} {
    %c0 = arith.constant 0 : index
    %c0_0 = arith.constant 0 : index
    %0 = vector.load %arg1[%c0, %c0_0] : memref<128x128xf32, #tpu.memory_space<vmem>>, vector<128x128xf32>
    %c0_1 = arith.constant 0 : index
    %c0_2 = arith.constant 0 : index
    %1 = vector.load %arg2[%c0_1, %c0_2] : memref<128x256xf32, #tpu.memory_space<vmem>>, vector<128x256xf32>
    %cst = arith.constant dense<0.000000e+00> : vector<128x256xf32>
    %2 = tpu.matmul %0, %1, %cst {dimension_numbers = #tpu.dot_dimension_numbers<[1], [0], [0], [1], [0, 0, 1, 1], [], []>} : vector<128x128xf32>, vector<128x256xf32>, vector<128x256xf32> -> vector<128x256xf32>
    %3 = vector.extract_strided_slice %2 {offsets = [0, 0], sizes = [128, 128], strides = [1, 1]} : vector<128x256xf32> to vector<128x128xf32>
    %4 = arith.truncf %3 : vector<128x128xf32> to vector<128x128xbf16>
    %c0_3 = arith.constant 0 : index
    %c0_4 = arith.constant 0 : index
    %5 = vector.load %arg5[%c0_3, %c0_4] : memref<128x128xbf16, #tpu.memory_space<vmem>>, vector<128x128xbf16>
    tpu.vector_store %arg5[%c0_3, %c0_4], %4 {strides = array<i32>} : memref<128x128xbf16, #tpu.memory_space<vmem>>, vector<128x128xbf16>,
    %6 = vector.extract_strided_slice %2 {offsets = [0, 128], sizes = [128, 128], strides = [1, 1]} : vector<128x256xf32> to vector<128x128xf32>
    %c0_5 = arith.constant 0 : index
    %c0_6 = arith.constant 0 : index
    %7 = vector.load %arg4[%c0_5, %c0_6] : memref<1x128xf32, #tpu.memory_space<vmem>>, vector<1x128xf32>
    %8 = vector.broadcast %7 : vector<1x128xf32> to vector<128x128xf32>
    %9 = arith.addf %6, %8 : vector<128x128xf32>
    %c0_7 = arith.constant 0 : index
    %c0_8 = arith.constant 0 : index
    %10 = vector.load %arg6[%c0_7, %c0_8] : memref<128x128xf32, #tpu.memory_space<vmem>>, vector<128x128xf32>
    tpu.vector_store %arg6[%c0_7, %c0_8], %9 {strides = array<i32>} : memref<128x128xf32, #tpu.memory_space<vmem>>, vector<128x128xf32>,
    %c0_9 = arith.constant 0 : index
    %c0_10 = arith.constant 0 : index
    %11 = vector.load %arg3[%c0_9, %c0_10] : memref<8x128xf32, #tpu.memory_space<vmem>>, vector<8x128xf32>
    %cst_11 = arith.constant dense<0.000000e+00> : vector<8x128xf32>
    %12 = tpu.matmul %11, %3, %cst_11 {dimension_numbers = #tpu.dot_dimension_numbers<[1], [1], [0], [0], [0, 0, 1, 0], [], []>} : vector<8x128xf32>, vector<128x128xf32>, vector<8x128xf32> -> vector<8x128xf32>
    %c0_12 = arith.constant 0 : index
    %c0_13 = arith.constant 0 : index
    %13 = vector.load %arg7[%c0_12, %c0_13] : memref<8x128xf32, #tpu.memory_space<vmem>>, vector<8x128xf32>
    tpu.vector_store %arg7[%c0_12, %c0_13], %12 {strides = array<i32>} : memref<8x128xf32, #tpu.memory_space<vmem>>, vector<8x128xf32>,
    return
  }
  func.func @transform_0(%arg0: i32) -> (i32, i32) {
    %c0_i32 = arith.constant 0 : i32
    %c0_i32_0 = arith.constant 0 : i32
    return %arg0, %c0_i32 : i32, i32
  }
  func.func @transform_1(%arg0: i32) -> (i32, i32) {
    %c0_i32 = arith.constant 0 : i32
    %c0_i32_0 = arith.constant 0 : i32
    %c0_i32_1 = arith.constant 0 : i32
    return %c0_i32, %c0_i32_0 : i32, i32
  }
  func.func @transform_2(%arg0: i32) -> (i32, i32) {
    %c0_i32 = arith.constant 0 : i32
    %c0_i32_0 = arith.constant 0 : i32
    %c0_i32_1 = arith.constant 0 : i32
    return %c0_i32, %c0_i32_0 : i32, i32
  }
  func.func @transform_3(%arg0: i32) -> (i32, i32) {
    %c0_i32 = arith.constant 0 : i32
    %c0_i32_0 = arith.constant 0 : i32
    %c0_i32_1 = arith.constant 0 : i32
    return %c0_i32, %c0_i32_0 : i32, i32
  }
  func.func @transform_4(%arg0: i32) -> (i32, i32) {
    %c0_i32 = arith.constant 0 : i32
    %c0_i32_0 = arith.constant 0 : i32
    return %arg0, %c0_i32 : i32, i32
  }
  func.func @transform_5(%arg0: i32) -> (i32, i32) {
    %c0_i32 = arith.constant 0 : i32
    %c0_i32_0 = arith.constant 0 : i32
    return %arg0, %c0_i32 : i32, i32
  }
  func.func @transform_6(%arg0: i32) -> (i32, i32) {
    %c0_i32 = arith.constant 0 : i32
    %c0_i32_0 = arith.constant 0 : i32
    return %c0_i32, %arg0 : i32, i32
  }
}

</mosaic_0001>

<llo_original>
// kernel: tpu_custom_call.1
$region0: #{tpu_custom_call.1}
  #allocation0 [shape = 'u32[]', space=smem, size = 0x4, offset = 0x4, fixed_abs, tag = 'smem constant byte address 0x4 - core index']
  #allocation1 [shape = 'u32[144,128]{1,0:T(1,128)}', space=vmem, size = 0x12000, scoped, tag = 'internal scratch']
  %s0 = inlined_call_operand.hbm [shape: f32[128,128], index: 0, kind: input, shape index: {}]
  %s1 = inlined_call_operand.hbm [shape: f32[128,256], index: 1, kind: input, shape index: {}]
  %s2 = inlined_call_operand.hbm [shape: f32[8,128], index: 2, kind: input, shape index: {}]
  %s3 = inlined_call_operand.vmem [shape: f32[1,128], index: 3, kind: input, shape index: {}]
  %s4 = inlined_call_operand.hbm [shape: bf16[128,128], index: 4, kind: output, shape index: {0}]
  %s5 = inlined_call_operand.hbm [shape: f32[128,128], index: 5, kind: output, shape index: {1}]
  %s6 = inlined_call_operand.hbm [shape: f32[8,128], index: 6, kind: output, shape index: {2}]
  %7 = xla_tuple %s4, %s5, %s6
  %s8 = sld [smem:[#allocation0]]
  $region54: #{tpu_custom_call.1} parent=0
    _
  %s10 = ssub.s32 1, %s8
  %s11 = scalar_select 0, %s10, %s8
  $region1: #{tpu_custom_call.1} parent=0
    #allocation2 [shape = 'u8[65536]{0}', space=vmem, size = 0x10000, scoped, tag = 'input window, operand 0, single buffered']
    #allocation3 [shape = 's32[1]{0}', space=sflag, size = 0x4, scoped, tag = 'scoped memory for tpu_custom_call.1']
    #allocation4 [shape = 's32[1]{0}', space=sflag, size = 0x4, scoped, tag = 'scoped memory for tpu_custom_call.1']
    #allocation5 [shape = 'u8[131072]{0}', space=vmem, size = 0x20000, scoped, tag = 'input window, operand 1, single buffered']
    #allocation6 [shape = 's32[1]{0}', space=sflag, size = 0x4, scoped, tag = 'scoped memory for tpu_custom_call.1']
    #allocation7 [shape = 'u8[4096]{0}', space=vmem, size = 0x1000, scoped, tag = 'input window, operand 2, single buffered']
    #allocation8 [shape = 'u8[32768]{0}', space=vmem, size = 0x8000, scoped, tag = 'output window, operand 0, single buffered']
    #allocation9 [shape = 'u8[65536]{0}', space=vmem, size = 0x10000, scoped, tag = 'output window, operand 1, single buffered']
    #allocation10 [shape = 's32[1]{0}', space=sflag, size = 0x4, scoped, tag = 'scoped memory for tpu_custom_call.1']
    #allocation11 [shape = 'u8[4096]{0}', space=vmem, size = 0x1000, scoped, tag = 'output window, operand 2, single buffered']
    %12 = vsyncpa [#allocation3], 0
    %13 = vsyncpa [#allocation6], 0
    %14 = vsyncpa [#allocation4], 0
    %15 = vsyncpa [#allocation10], 0
    // Predicated region
    $region2: #{tpu_custom_call.1} parent=1 // pred_check
      _
    $region3: #{tpu_custom_call.1} parent=1 // pred_check_branch
      %17 = sbr.rel (0) target = $region5
    $region4: #{tpu_custom_call.1} parent=1 // pred_region
      %s19 = ssub.s32 2048, 2048
      %20 = vsyncadd [#allocation3], %s19
      %s21 = sshll.u32 [#allocation2], 4
      %s22 = int_to_ptr.vmem [resolvable:$true] %s21
      %27 = dma.hbm_to_vmem [thread:$0]  %s0, 2048, %s22, [#allocation3], 128, 128, 8
    $region5: #{tpu_custom_call.1} parent=1 // pred_fallthru
      _
    // Predicated region
    $region6: #{tpu_custom_call.1} parent=1 // pred_check
      _
    $region7: #{tpu_custom_call.1} parent=1 // pred_check_branch
      %29 = sbr.rel (0) target = $region9
    $region8: #{tpu_custom_call.1} parent=1 // pred_region
      %s31 = ssub.s32 4096, 4096
      %32 = vsyncadd [#allocation6], %s31
      %s33 = sshll.u32 [#allocation5], 4
      %s34 = int_to_ptr.vmem [resolvable:$true] %s33
      %39 = dma.hbm_to_vmem [thread:$0]  %s1, 4096, %s34, [#allocation6], 256, 256, 16
    $region9: #{tpu_custom_call.1} parent=1 // pred_fallthru
      _
    // Predicated region
    $region10: #{tpu_custom_call.1} parent=1 // pred_check
      _
    $region11: #{tpu_custom_call.1} parent=1 // pred_check_branch
      %41 = sbr.rel (0) target = $region13
    $region12: #{tpu_custom_call.1} parent=1 // pred_region
      %s43 = ssub.s32 128, 128
      %44 = vsyncadd [#allocation6], %s43
      %s46 = sshll.u32 [#allocation7], 4
      %s47 = int_to_ptr.vmem [resolvable:$true] %s46
      %49 = dma.hbm_to_vmem [thread:$0]  %s2, 128, %s47, [#allocation6]
    $region13: #{tpu_custom_call.1} parent=1 // pred_fallthru
      _
    // Predicated region
    $region14: #{tpu_custom_call.1} parent=1 // pred_check
      _
    $region15: #{tpu_custom_call.1} parent=1 // pred_check_branch
      %51 = sbr.rel (0) target = $region17
    $region16: #{tpu_custom_call.1} parent=1 // pred_region
      _
    $region17: #{tpu_custom_call.1} parent=1 // pred_fallthru
      _
    // Predicated region
    $region18: #{tpu_custom_call.1} parent=1 // pred_check
      _
    $region19: #{tpu_custom_call.1} parent=1 // pred_check_branch
      %53 = sbr.rel (0) target = $region21
    $region20: #{tpu_custom_call.1} parent=1 // pred_region
      %54 = dma.done [#allocation3], 2048
    $region21: #{tpu_custom_call.1} parent=1 // pred_fallthru
      _
    // Predicated region
    $region22: #{tpu_custom_call.1} parent=1 // pred_check
      _
    $region23: #{tpu_custom_call.1} parent=1 // pred_check_branch
      %56 = sbr.rel (0) target = $region25
    $region24: #{tpu_custom_call.1} parent=1 // pred_region
      %57 = dma.done [#allocation6], 4096
    $region25: #{tpu_custom_call.1} parent=1 // pred_fallthru
      _
    // Predicated region
    $region26: #{tpu_custom_call.1} parent=1 // pred_check
      _
    $region27: #{tpu_custom_call.1} parent=1 // pred_check_branch
      %59 = sbr.rel (0) target = $region29
    $region28: #{tpu_custom_call.1} parent=1 // pred_region
      %60 = dma.done [#allocation6], 128
    $region29: #{tpu_custom_call.1} parent=1 // pred_fallthru
      _
    %v61 = vld [vmem:[#allocation2] sm:$0xff]
    %v62 = vld [vmem:[#allocation2 + $0x8] sm:$0xff]
    %v63 = vld [vmem:[#allocation2 + $0x10] sm:$0xff]
    %v64 = vld [vmem:[#allocation2 + $0x18] sm:$0xff]
    %v65 = vld [vmem:[#allocation2 + $0x20] sm:$0xff]
    %v66 = vld [vmem:[#allocation2 + $0x28] sm:$0xff]
    %v67 = vld [vmem:[#allocation2 + $0x30] sm:$0xff]
    %v68 = vld [vmem:[#allocation2 + $0x38] sm:$0xff]
    %v69 = vld [vmem:[#allocation2 + $0x40] sm:$0xff]
    %v70 = vld [vmem:[#allocation2 + $0x48] sm:$0xff]
    %v71 = vld [vmem:[#allocation2 + $0x50] sm:$0xff]
    %v72 = vld [vmem:[#allocation2 + $0x58] sm:$0xff]
    %v73 = vld [vmem:[#allocation2 + $0x60] sm:$0xff]
    %v74 = vld [vmem:[#allocation2 + $0x68] sm:$0xff]
    %v75 = vld [vmem:[#allocation2 + $0x70] sm:$0xff]
    %v76 = vld [vmem:[#allocation2 + $0x78] sm:$0xff]
    %v77 = vld [vmem:[#allocation5] sm:$0xff]
    %v78 = vld [vmem:[#allocation5 + $0x8] sm:$0xff]
    %v79 = vld [vmem:[#allocation5 + $0x10] sm:$0xff]
    %v80 = vld [vmem:[#allocation5 + $0x18] sm:$0xff]
    %v81 = vld [vmem:[#allocation5 + $0x20] sm:$0xff]
    %v82 = vld [vmem:[#allocation5 + $0x28] sm:$0xff]
    %v83 = vld [vmem:[#allocation5 + $0x30] sm:$0xff]
    %v84 = vld [vmem:[#allocation5 + $0x38] sm:$0xff]
    %v85 = vld [vmem:[#allocation5 + $0x40] sm:$0xff]
    %v86 = vld [vmem:[#allocation5 + $0x48] sm:$0xff]
    %v87 = vld [vmem:[#allocation5 + $0x50] sm:$0xff]
    %v88 = vld [vmem:[#allocation5 + $0x58] sm:$0xff]
    %v89 = vld [vmem:[#allocation5 + $0x60] sm:$0xff]
    %v90 = vld [vmem:[#allocation5 + $0x68] sm:$0xff]
    %v91 = vld [vmem:[#allocation5 + $0x70] sm:$0xff]
    %v92 = vld [vmem:[#allocation5 + $0x78] sm:$0xff]
    %v93 = vld [vmem:[#allocation5 + $0x80] sm:$0xff]
    %v94 = vld [vmem:[#allocation5 + $0x88] sm:$0xff]
    %v95 = vld [vmem:[#allocation5 + $0x90] sm:$0xff]
    %v96 = vld [vmem:[#allocation5 + $0x98] sm:$0xff]
    %v97 = vld [vmem:[#allocation5 + $0xa0] sm:$0xff]
    %v98 = vld [vmem:[#allocation5 + $0xa8] sm:$0xff]
    %v99 = vld [vmem:[#allocation5 + $0xb0] sm:$0xff]
    %v100 = vld [vmem:[#allocation5 + $0xb8] sm:$0xff]
    %v101 = vld [vmem:[#allocation5 + $0xc0] sm:$0xff]
    %v102 = vld [vmem:[#allocation5 + $0xc8] sm:$0xff]
    %v103 = vld [vmem:[#allocation5 + $0xd0] sm:$0xff]
    %v104 = vld [vmem:[#allocation5 + $0xd8] sm:$0xff]
    %v105 = vld [vmem:[#allocation5 + $0xe0] sm:$0xff]
    %v106 = vld [vmem:[#allocation5 + $0xe8] sm:$0xff]
    %v107 = vld [vmem:[#allocation5 + $0xf0] sm:$0xff]
    %v108 = vld [vmem:[#allocation5 + $0xf8] sm:$0xff]
    %109 = vmatprep.subr.mxu0 %v78
    %110 = vmatpush1.msra.mxu0 %v77
    %111 = vmatprep.subr.mxu0 %v80
    %112 = vmatpush1.msra.mxu0 %v79
    %113 = vmatprep.subr.mxu0 %v82
    %114 = vmatpush1.msra.mxu0 %v81
    %115 = vmatprep.subr.mxu0 %v84
    %116 = vmatpush1.msra.mxu0 %v83
    %117 = vmatprep.subr.mxu0 %v86
    %118 = vmatpush1.msra.mxu0 %v85
    %119 = vmatprep.subr.mxu0 %v88
    %120 = vmatpush1.msra.mxu0 %v87
    %121 = vmatprep.subr.mxu0 %v90
    %122 = vmatpush1.msra.mxu0 %v89
    %123 = vmatprep.subr.mxu0 %v92
    %124 = vmatpush1.msra.mxu0 %v91
    %125 = vmatprep.subr.mxu0 %v94
    %126 = vmatpush1.msra.mxu0 %v93
    %127 = vmatprep.subr.mxu0 %v96
    %128 = vmatpush1.msra.mxu0 %v95
    %129 = vmatprep.subr.mxu0 %v98
    %130 = vmatpush1.msra.mxu0 %v97
    %131 = vmatprep.subr.mxu0 %v100
    %132 = vmatpush1.msra.mxu0 %v99
    %133 = vmatprep.subr.mxu0 %v102
    %134 = vmatpush1.msra.mxu0 %v101
    %135 = vmatprep.subr.mxu0 %v104
    %136 = vmatpush1.msra.mxu0 %v103
    %137 = vmatprep.subr.mxu0 %v106
    %138 = vmatpush1.msra.mxu0 %v105
    %139 = vmatprep.subr.mxu0 %v108
    %140 = vmatpush1.msra.mxu0 %v107
    %141 = vmatprep.subr.mxu0 0.0
    %142 = vmatpush1.msra.mxu0 0.0
    %143 = vmatprep.subr.mxu0 0.0
    %144 = vmatpush1.msra.mxu0 0.0
    %145 = vmatprep.subr.mxu0 0.0
    %146 = vmatpush1.msra.mxu0 0.0
    %147 = vmatprep.subr.mxu0 0.0
    %148 = vmatpush1.msra.mxu0 0.0
    %149 = vmatprep.subr.mxu0 0.0
    %150 = vmatpush1.msra.mxu0 0.0
    %151 = vmatprep.subr.mxu0 0.0
    %152 = vmatpush1.msra.mxu0 0.0
    %153 = vmatprep.subr.mxu0 0.0
    %154 = vmatpush1.msra.mxu0 0.0
    %155 = vmatprep.subr.mxu0 0.0
    %156 = vmatpush1.msra.mxu0 0.0
    %157 = vmatprep.subr.mxu0 0.0
    %158 = vmatpush1.msra.mxu0 0.0
    %159 = vmatprep.subr.mxu0 0.0
    %160 = vmatpush1.msra.mxu0 0.0
    %161 = vmatprep.subr.mxu0 0.0
    %162 = vmatpush1.msra.mxu0 0.0
    %163 = vmatprep.subr.mxu0 0.0
    %164 = vmatpush1.msra.mxu0 0.0
    %165 = vmatprep.subr.mxu0 0.0
    %166 = vmatpush1.msra.mxu0 0.0
    %167 = vmatprep.subr.mxu0 0.0
    %168 = vmatpush1.msra.mxu0 0.0
    %169 = vmatprep.subr.mxu0 0.0
    %170 = vmatpush1.msra.mxu0 0.0
    %171 = vmatprep.subr.mxu0 0.0
    %172 = vmatpush1.msra.mxu0 0.0
    %173 = vmatprep.mubr.f32.mxu0 0.0
    %174 = vmatmul.mubr.f32.gmra.mrb[0].mxu0 %v61
    %v175 = vpop.f32.mrb[0].mxu0
    %v176 = vadd.f32 0.0, %v175
    %v177 = vpop.f32.mrb[0].mxu0
    %v178 = vadd.f32 0.0, %v177
    %179 = vmatprep.mubr.f32.mxu0 0.0
    %180 = vmatmul.mubr.f32.gmra.mrb[0].mxu0 %v62
    %v181 = vpop.f32.mrb[0].mxu0
    %v182 = vadd.f32 0.0, %v181
    %v183 = vpop.f32.mrb[0].mxu0
    %v184 = vadd.f32 0.0, %v183
    %185 = vmatprep.mubr.f32.mxu0 0.0
    %186 = vmatmul.mubr.f32.gmra.mrb[0].mxu0 %v63
    %v187 = vpop.f32.mrb[0].mxu0
    %v188 = vadd.f32 0.0, %v187
    %v189 = vpop.f32.mrb[0].mxu0
    %v190 = vadd.f32 0.0, %v189
    %191 = vmatprep.mubr.f32.mxu0 0.0
    %192 = vmatmul.mubr.f32.gmra.mrb[0].mxu0 %v64
    %v193 = vpop.f32.mrb[0].mxu0
    %v194 = vadd.f32 0.0, %v193
    %v195 = vpop.f32.mrb[0].mxu0
    %v196 = vadd.f32 0.0, %v195
    %197 = vmatprep.mubr.f32.mxu0 0.0
    %198 = vmatmul.mubr.f32.gmra.mrb[0].mxu0 %v65
    %v199 = vpop.f32.mrb[0].mxu0
    %v200 = vadd.f32 0.0, %v199
    %v201 = vpop.f32.mrb[0].mxu0
    %v202 = vadd.f32 0.0, %v201
    %203 = vmatprep.mubr.f32.mxu0 0.0
    %204 = vmatmul.mubr.f32.gmra.mrb[0].mxu0 %v66
    %v205 = vpop.f32.mrb[0].mxu0
    %v206 = vadd.f32 0.0, %v205
    %v207 = vpop.f32.mrb[0].mxu0
    %v208 = vadd.f32 0.0, %v207
    %209 = vmatprep.mubr.f32.mxu0 0.0
    %210 = vmatmul.mubr.f32.gmra.mrb[0].mxu0 %v67
    %v211 = vpop.f32.mrb[0].mxu0
    %v212 = vadd.f32 0.0, %v211
    %v213 = vpop.f32.mrb[0].mxu0
    %v214 = vadd.f32 0.0, %v213
    %215 = vmatprep.mubr.f32.mxu0 0.0
    %216 = vmatmul.mubr.f32.gmra.mrb[0].mxu0 %v68
    %v217 = vpop.f32.mrb[0].mxu0
    %v218 = vadd.f32 0.0, %v217
    %v219 = vpop.f32.mrb[0].mxu0
    %v220 = vadd.f32 0.0, %v219
    %221 = vmatprep.mubr.f32.mxu0 0.0
    %222 = vmatmul.mubr.f32.gmra.mrb[0].mxu0 %v69
    %v223 = vpop.f32.mrb[0].mxu0
    %v224 = vadd.f32 0.0, %v223
    %v225 = vpop.f32.mrb[0].mxu0
    %v226 = vadd.f32 0.0, %v225
    %227 = vmatprep.mubr.f32.mxu0 0.0
    %228 = vmatmul.mubr.f32.gmra.mrb[0].mxu0 %v70
    %v229 = vpop.f32.mrb[0].mxu0
    %v230 = vadd.f32 0.0, %v229
    %v231 = vpop.f32.mrb[0].mxu0
    %v232 = vadd.f32 0.0, %v231
    %233 = vmatprep.mubr.f32.mxu0 0.0
    %234 = vmatmul.mubr.f32.gmra.mrb[0].mxu0 %v71
    %v235 = vpop.f32.mrb[0].mxu0
    %v236 = vadd.f32 0.0, %v235
    %v237 = vpop.f32.mrb[0].mxu0
    %v238 = vadd.f32 0.0, %v237
    %239 = vmatprep.mubr.f32.mxu0 0.0
    %240 = vmatmul.mubr.f32.gmra.mrb[0].mxu0 %v72
    %v241 = vpop.f32.mrb[0].mxu0
    %v242 = vadd.f32 0.0, %v241
    %v243 = vpop.f32.mrb[0].mxu0
    %v244 = vadd.f32 0.0, %v243
    %245 = vmatprep.mubr.f32.mxu0 0.0
    %246 = vmatmul.mubr.f32.gmra.mrb[0].mxu0 %v73
    %v247 = vpop.f32.mrb[0].mxu0
    %v248 = vadd.f32 0.0, %v247
    %v249 = vpop.f32.mrb[0].mxu0
    %v250 = vadd.f32 0.0, %v249
    %251 = vmatprep.mubr.f32.mxu0 0.0
    %252 = vmatmul.mubr.f32.gmra.mrb[0].mxu0 %v74
    %v253 = vpop.f32.mrb[0].mxu0
    %v254 = vadd.f32 0.0, %v253
    %v255 = vpop.f32.mrb[0].mxu0
    %v256 = vadd.f32 0.0, %v255
    %257 = vmatprep.mubr.f32.mxu0 0.0
    %258 = vmatmul.mubr.f32.gmra.mrb[0].mxu0 %v75
    %v259 = vpop.f32.mrb[0].mxu0
    %v260 = vadd.f32 0.0, %v259
    %v261 = vpop.f32.mrb[0].mxu0
    %v262 = vadd.f32 0.0, %v261
    %263 = vmatprep.mubr.f32.mxu0 0.0
    %264 = vmatmul.mubr.f32.gmra.mrb[0].mxu0 %v76
    %v265 = vpop.f32.mrb[0].mxu0
    %v266 = vadd.f32 0.0, %v265
    %v267 = vpop.f32.mrb[0].mxu0
    %v268 = vadd.f32 0.0, %v267
    %269 = vdwg.mxu0
    %v270 = vpack.c.bf16 %v182, %v176
    %v271 = vpack.c.bf16 %v194, %v188
    %v272 = vpack.c.bf16 %v206, %v200
    %v273 = vpack.c.bf16 %v218, %v212
    %v274 = vpack.c.bf16 %v230, %v224
    %v275 = vpack.c.bf16 %v242, %v236
    %v276 = vpack.c.bf16 %v254, %v248
    %v277 = vpack.c.bf16 %v266, %v260
    %v286 = vunpack.c.l.b16 %v270
    %v287 = vunpack.c.h.b16 %v270
    %v288 = vunpack.c.l.b16 %v271
    %v289 = vunpack.c.h.b16 %v271
    %v290 = vunpack.c.l.b16 %v272
    %v291 = vunpack.c.h.b16 %v272
    %v292 = vunpack.c.l.b16 %v273
    %v293 = vunpack.c.h.b16 %v273
    %v294 = vunpack.c.l.b16 %v274
    %v295 = vunpack.c.h.b16 %v274
    %v296 = vunpack.c.l.b16 %v275
    %v297 = vunpack.c.h.b16 %v275
    %v298 = vunpack.c.l.b16 %v276
    %v299 = vunpack.c.h.b16 %v276
    %v300 = vunpack.c.l.b16 %v277
    %v301 = vunpack.c.h.b16 %v277
    %v302 = vpack.c.b16 %v286, %v286
    %v303 = vpack.c.b16 %v287, %v287
    %v304 = vpack.c.b16 %v288, %v288
    %v305 = vpack.c.b16 %v289, %v289
    %v306 = vpack.c.b16 %v290, %v290
    %v307 = vpack.c.b16 %v291, %v291
    %v308 = vpack.c.b16 %v292, %v292
    %v309 = vpack.c.b16 %v293, %v293
    %v310 = vpack.c.b16 %v294, %v294
    %v311 = vpack.c.b16 %v295, %v295
    %v312 = vpack.c.b16 %v296, %v296
    %v313 = vpack.c.b16 %v297, %v297
    %v314 = vpack.c.b16 %v298, %v298
    %v315 = vpack.c.b16 %v299, %v299
    %v316 = vpack.c.b16 %v300, %v300
    %v317 = vpack.c.b16 %v301, %v301
    %334 = vst [vmem:[#allocation8] sm:$0xf] %v302
    %335 = vst [vmem:[#allocation8 + $0x4] sm:$0xf] %v303
    %336 = vst [vmem:[#allocation8 + $0x8] sm:$0xf] %v304
    %337 = vst [vmem:[#allocation8 + $0xc] sm:$0xf] %v305
    %338 = vst [vmem:[#allocation8 + $0x10] sm:$0xf] %v306
    %339 = vst [vmem:[#allocation8 + $0x14] sm:$0xf] %v307
    %340 = vst [vmem:[#allocation8 + $0x18] sm:$0xf] %v308
    %341 = vst [vmem:[#allocation8 + $0x1c] sm:$0xf] %v309
    %342 = vst [vmem:[#allocation8 + $0x20] sm:$0xf] %v310
    %343 = vst [vmem:[#allocation8 + $0x24] sm:$0xf] %v311
    %344 = vst [vmem:[#allocation8 + $0x28] sm:$0xf] %v312
    %345 = vst [vmem:[#allocation8 + $0x2c] sm:$0xf] %v313
    %346 = vst [vmem:[#allocation8 + $0x30] sm:$0xf] %v314
    %347 = vst [vmem:[#allocation8 + $0x34] sm:$0xf] %v315
    %348 = vst [vmem:[#allocation8 + $0x38] sm:$0xf] %v316
    %349 = vst [vmem:[#allocation8 + $0x3c] sm:$0xf] %v317
    %v350 = vld [vmem:[%s3] sm:$0x1]
    %v352 = vlaneseq
    %v353 = vshrl.u32 %v352, 7
    %v354 = vsub.s32 0, %v353
    %v355 = vrot.slane %v350, %v354
    %v357 = vadd.f32 %v178, %v355
    %v358 = vadd.f32 %v184, %v355
    %v359 = vadd.f32 %v190, %v355
    %v360 = vadd.f32 %v196, %v355
    %v361 = vadd.f32 %v202, %v355
    %v362 = vadd.f32 %v208, %v355
    %v363 = vadd.f32 %v214, %v355
    %v364 = vadd.f32 %v220, %v355
    %v365 = vadd.f32 %v226, %v355
    %v366 = vadd.f32 %v232, %v355
    %v367 = vadd.f32 %v238, %v355
    %v368 = vadd.f32 %v244, %v355
    %v369 = vadd.f32 %v250, %v355
    %v370 = vadd.f32 %v256, %v355
    %v371 = vadd.f32 %v262, %v355
    %v372 = vadd.f32 %v268, %v355
    %373 = vst [vmem:[#allocation9] sm:$0xff] %v357
    %374 = vst [vmem:[#allocation9 + $0x8] sm:$0xff] %v358
    %375 = vst [vmem:[#allocation9 + $0x10] sm:$0xff] %v359
    %376 = vst [vmem:[#allocation9 + $0x18] sm:$0xff] %v360
    %377 = vst [vmem:[#allocation9 + $0x20] sm:$0xff] %v361
    %378 = vst [vmem:[#allocation9 + $0x28] sm:$0xff] %v362
    %379 = vst [vmem:[#allocation9 + $0x30] sm:$0xff] %v363
    %380 = vst [vmem:[#allocation9 + $0x38] sm:$0xff] %v364
    %381 = vst [vmem:[#allocation9 + $0x40] sm:$0xff] %v365
    %382 = vst [vmem:[#allocation9 + $0x48] sm:$0xff] %v366
    %383 = vst [vmem:[#allocation9 + $0x50] sm:$0xff] %v367
    %384 = vst [vmem:[#allocation9 + $0x58] sm:$0xff] %v368
    %385 = vst [vmem:[#allocation9 + $0x60] sm:$0xff] %v369
    %386 = vst [vmem:[#allocation9 + $0x68] sm:$0xff] %v370
    %387 = vst [vmem:[#allocation9 + $0x70] sm:$0xff] %v371
    %388 = vst [vmem:[#allocation9 + $0x78] sm:$0xff] %v372
    %v389 = vld [vmem:[#allocation7] sm:$0xff]
    %390 = vmatprep.subr.mxu0 0.0
    %391 = vmatpush1.xpose.msra.mxu0 %v176
    %392 = vmatprep.subr.mxu0 0.0
    %393 = vmatpush1.xpose.msra.mxu0 %v182
    %394 = vmatprep.subr.mxu0 0.0
    %395 = vmatpush1.xpose.msra.mxu0 %v188
    %396 = vmatprep.subr.mxu0 0.0
    %397 = vmatpush1.xpose.msra.mxu0 %v194
    %398 = vmatprep.subr.mxu0 0.0
    %399 = vmatpush1.xpose.msra.mxu0 %v200
    %400 = vmatprep.subr.mxu0 0.0
    %401 = vmatpush1.xpose.msra.mxu0 %v206
    %402 = vmatprep.subr.mxu0 0.0
    %403 = vmatpush1.xpose.msra.mxu0 %v212
    %404 = vmatprep.subr.mxu0 0.0
    %405 = vmatpush1.xpose.msra.mxu0 %v218
    %406 = vmatprep.subr.mxu0 0.0
    %407 = vmatpush1.xpose.msra.mxu0 %v224
    %408 = vmatprep.subr.mxu0 0.0
    %409 = vmatpush1.xpose.msra.mxu0 %v230
    %410 = vmatprep.subr.mxu0 0.0
    %411 = vmatpush1.xpose.msra.mxu0 %v236
    %412 = vmatprep.subr.mxu0 0.0
    %413 = vmatpush1.xpose.msra.mxu0 %v242
    %414 = vmatprep.subr.mxu0 0.0
    %415 = vmatpush1.xpose.msra.mxu0 %v248
    %416 = vmatprep.subr.mxu0 0.0
    %417 = vmatpush1.xpose.msra.mxu0 %v254
    %418 = vmatprep.subr.mxu0 0.0
    %419 = vmatpush1.xpose.msra.mxu0 %v260
    %420 = vmatprep.subr.mxu0 0.0
    %421 = vmatpush1.xpose.msra.mxu0 %v266
    %422 = vmatprep.subr.mxu0 0.0
    %423 = vmatpush1.xpose.msra.mxu0 0.0
    %424 = vmatprep.subr.mxu0 0.0
    %425 = vmatpush1.xpose.msra.mxu0 0.0
    %426 = vmatprep.subr.mxu0 0.0
    %427 = vmatpush1.xpose.msra.mxu0 0.0
    %428 = vmatprep.subr.mxu0 0.0
    %429 = vmatpush1.xpose.msra.mxu0 0.0
    %430 = vmatprep.subr.mxu0 0.0
    %431 = vmatpush1.xpose.msra.mxu0 0.0
    %432 = vmatprep.subr.mxu0 0.0
    %433 = vmatpush1.xpose.msra.mxu0 0.0
    %434 = vmatprep.subr.mxu0 0.0
    %435 = vmatpush1.xpose.msra.mxu0 0.0
    %436 = vmatprep.subr.mxu0 0.0
    %437 = vmatpush1.xpose.msra.mxu0 0.0
    %438 = vmatprep.subr.mxu0 0.0
    %439 = vmatpush1.xpose.msra.mxu0 0.0
    %440 = vmatprep.subr.mxu0 0.0
    %441 = vmatpush1.xpose.msra.mxu0 0.0
    %442 = vmatprep.subr.mxu0 0.0
    %443 = vmatpush1.xpose.msra.mxu0 0.0
    %444 = vmatprep.subr.mxu0 0.0
    %445 = vmatpush1.xpose.msra.mxu0 0.0
    %446 = vmatprep.subr.mxu0 0.0
    %447 = vmatpush1.xpose.msra.mxu0 0.0
    %448 = vmatprep.subr.mxu0 0.0
    %449 = vmatpush1.xpose.msra.mxu0 0.0
    %450 = vmatprep.subr.mxu0 0.0
    %451 = vmatpush1.xpose.msra.mxu0 0.0
    %452 = vmatprep.subr.mxu0 0.0
    %453 = vmatpush1.xpose.msra.mxu0 0.0
    %454 = vmatprep.mubr.f32.mxu0 0.0
    %455 = vmatmul.mubr.f32.gmra.mrb[0].mxu0 %v389
    %v456 = vpop.f32.mrb[0].mxu0
    %v457 = vadd.f32 0.0, %v456
    %v458 = vpop.f32.mrb[0].mxu0
    %459 = vdwg.mxu0
    %460 = vst [vmem:[#allocation11] sm:$0xff] %v457
    // Predicated region
    $region30: #{tpu_custom_call.1} parent=1 // pred_check
      _
    $region31: #{tpu_custom_call.1} parent=1 // pred_check_branch
      %462 = sbr.rel (0) target = $region33
    $region32: #{tpu_custom_call.1} parent=1 // pred_region
      %s464 = ssub.s32 1024, 1024
      %465 = vsyncadd [#allocation4], %s464
      %s466 = sshll.u32 [#allocation8], 4
      %s467 = int_to_ptr.vmem [resolvable:$true] %s466
      %472 = dma.vmem_to_hbm [thread:$0]  %s467, 1024, %s4, [#allocation4], 64, 64, 4
    $region33: #{tpu_custom_call.1} parent=1 // pred_fallthru
      _
    // Predicated region
    $region34: #{tpu_custom_call.1} parent=1 // pred_check
      _
    $region35: #{tpu_custom_call.1} parent=1 // pred_check_branch
      %474 = sbr.rel (0) target = $region37
    $region36: #{tpu_custom_call.1} parent=1 // pred_region
      %s476 = ssub.s32 2048, 2048
      %477 = vsyncadd [#allocation10], %s476
      %s478 = sshll.u32 [#allocation9], 4
      %s479 = int_to_ptr.vmem [resolvable:$true] %s478
      %484 = dma.vmem_to_hbm [thread:$0]  %s479, 2048, %s5, [#allocation10], 128, 128, 8
    $region37: #{tpu_custom_call.1} parent=1 // pred_fallthru
      _
    // Predicated region
    $region38: #{tpu_custom_call.1} parent=1 // pred_check
      _
    $region39: #{tpu_custom_call.1} parent=1 // pred_check_branch
      %486 = sbr.rel (0) target = $region41
    $region40: #{tpu_custom_call.1} parent=1 // pred_region
      %s488 = ssub.s32 128, 128
      %489 = vsyncadd [#allocation10], %s488
      %s491 = sshll.u32 [#allocation11], 4
      %s492 = int_to_ptr.vmem [resolvable:$true] %s491
      %494 = dma.vmem_to_hbm [thread:$0]  %s492, 128, %s6, [#allocation10]
    $region41: #{tpu_custom_call.1} parent=1 // pred_fallthru
      _
    // Predicated region
    $region42: #{tpu_custom_call.1} parent=1 // pred_check
      _
    $region43: #{tpu_custom_call.1} parent=1 // pred_check_branch
      %496 = sbr.rel (0) target = $region45
    $region44: #{tpu_custom_call.1} parent=1 // pred_region
      %497 = dma.done [#allocation4], 1024
    $region45: #{tpu_custom_call.1} parent=1 // pred_fallthru
      _
    // Predicated region
    $region46: #{tpu_custom_call.1} parent=1 // pred_check
      _
    $region47: #{tpu_custom_call.1} parent=1 // pred_check_branch
      %499 = sbr.rel (0) target = $region49
    $region48: #{tpu_custom_call.1} parent=1 // pred_region
      %500 = dma.done [#allocation10], 2048
    $region49: #{tpu_custom_call.1} parent=1 // pred_fallthru
      _
    // Predicated region
    $region50: #{tpu_custom_call.1} parent=1 // pred_check
      _
    $region51: #{tpu_custom_call.1} parent=1 // pred_check_branch
      %502 = sbr.rel (0) target = $region53
    $region52: #{tpu_custom_call.1} parent=1 // pred_region
      %503 = dma.done [#allocation10], 128
    $region53: #{tpu_custom_call.1} parent=1 // pred_fallthru
      _
    %504 = vsyncpa [#allocation3], 1
    %505 = vsyncpa [#allocation6], 1
    %506 = vsyncpa [#allocation4], 1
    %507 = vsyncpa [#allocation10], 1

</llo_original>
